<compile_context>
chip_gen: v6e
topology: v6e:2x2x1
jax: 0.10.0
libtpu: 0.0.40
codegen_flags: <defaults>
</compile_context>

<pallas_src>
import functools
import math

import jax
import jax.numpy as jnp
from jax import lax
from jax.experimental import pallas as pl
from jax.experimental.pallas import tpu as pltpu


def _round_up(x: int, m: int) -> int:
    return (x + m - 1) // m * m


def _largest_divisor_tile(padded: int, quantum: int, cap: int) -> int:
    """Largest multiple of `quantum` that divides `padded` and is <= cap."""
    best = quantum
    units = padded // quantum
    for d in range(1, units + 1):
        t = d * quantum
        if units % d == 0 and t <= cap:
            best = t
    return best


def _vmem_budget_bytes() -> int:
    """~3/4 of physical VMEM (48 MiB on v7x, 96 MiB on v5e/v6e); safe fallback."""
    try:
        info = pltpu.get_tpu_info()
        cap = getattr(info, "vmem_capacity_bytes", None)
        if cap:
            return (int(cap) * 3) // 4
    except Exception:
        pass
    return 48 * 1024 * 1024


# ----------------------------- kernels ------------------------------------ #

def _equal_linear_kernel_single_k(x_ref, w_ref, b_ref, o_ref, *, scale):
    # x_ref: (tm, k_pad), w_ref: (k_pad, tn) pre-transposed, b_ref: (1, tn) f32.
    acc = jnp.dot(x_ref[...], w_ref[...], preferred_element_type=jnp.float32)
    o_ref[...] = (acc * scale + b_ref[...]).astype(o_ref.dtype)


def _equal_linear_kernel_multi_k(x_ref, w_ref, b_ref, o_ref, acc_ref, *,
                                 scale, tk, x_k_resident):
    k = pl.program_id(2)
    if x_k_resident:
        start = pl.multiple_of(k * tk, 128)
        x_tile = x_ref[:, pl.ds(start, tk)]
    else:
        x_tile = x_ref[...]
    part = jnp.dot(x_tile, w_ref[...], preferred_element_type=jnp.float32)

    @pl.when(k == 0)
    def _first():
        acc_ref[...] = part          # write-on-first-K: no zero-fill + reload

    @pl.when(k > 0)
    def _rest():
        acc_ref[...] += part

    @pl.when(k == pl.num_programs(2) - 1)
    def _finalize():
        o_ref[...] = (acc_ref[...] * scale + b_ref[...]).astype(o_ref.dtype)


# --------------------------- host-side wrapper ----------------------------- #

def prepare_equal_linear(weight_orig, bias, *, weight_dtype=None):
    """One-time parameter prep: optional cast, transpose to (in,out), pad to 128."""
    out_dim, in_dim = weight_orig.shape
    assert bias.shape == (out_dim,)
    scale = math.sqrt(2.0 / in_dim)            # fan_in uses the TRUE in_dim

    w = weight_orig.astype(weight_dtype) if weight_dtype is not None else weight_orig
    k_pad = _round_up(in_dim, 128)
    n_pad = _round_up(out_dim, 128)

    w_t = jnp.transpose(w)                     # (in_dim, out_dim): no in-kernel transpose
    if (k_pad, n_pad) != (in_dim, out_dim):
        w_t = jnp.pad(w_t, ((0, k_pad - in_dim), (0, n_pad - out_dim)))
    b = bias.astype(jnp.float32)
    if n_pad != out_dim:
        b = jnp.pad(b, (0, n_pad - out_dim))
    b = b.reshape(1, n_pad)

    return {"w_t": w_t, "b": b, "in_dim": in_dim, "out_dim": out_dim,
            "k_pad": k_pad, "n_pad": n_pad, "scale": scale}


def equal_linear_apply(x, params):
    B, in_dim = x.shape
    assert in_dim == params["in_dim"]
    out_dim = params["out_dim"]
    k_pad, n_pad = params["k_pad"], params["n_pad"]
    w_t, b, scale = params["w_t"], params["b"], params["scale"]

    out_dtype = x.dtype
    compute_dtype = w_t.dtype
    if x.dtype != compute_dtype:
        x = x.astype(compute_dtype)

    c_size = jnp.dtype(compute_dtype).itemsize
    o_size = jnp.dtype(out_dtype).itemsize
    m_quant = {4: 8, 2: 16, 1: 32}.get(c_size, 8)
    m_pad = _round_up(max(B, 1), m_quant)

    budget = _vmem_budget_bytes()

    # ---- tile selection: tiles divide the (128 / m_quant)-padded dims ----
    tm = _largest_divisor_tile(m_pad, m_quant, 512)
    tn = _largest_divisor_tile(n_pad, 128, 1024)
    single_k = k_pad * c_size <= 8192          # <= 2048 f32 / 4096 bf16
    tk = k_pad if single_k else _largest_divisor_tile(k_pad, 128, 8192 // c_size)

    # >= 2 blocks along the parallel axes when possible (v7x: 2 TensorCores)
    if (m_pad // tm) * (n_pad // tn) == 1:
        if (tn // 2) % 128 == 0:
            tn //= 2
        elif (tm // 2) % m_quant == 0:
            tm //= 2

    # K-resident activation (DMA'd once per M tile) when it fits comfortably
    x_k_resident = single_k or (2 * tm * k_pad * c_size <= budget // 4)

    # Safety net: shrink tiles until the double-buffered footprint fits VMEM
    def _footprint(tm_, tn_):
        x_cols = k_pad if x_k_resident else tk
        fb = 2 * tm_ * x_cols * c_size            # x (double-buffered)
        fb += 2 * tk * tn_ * c_size               # weight
        fb += 2 * tn_ * 4                         # bias
        fb += 2 * tm_ * tn_ * o_size              # output
        if not single_k:
            fb += tm_ * tn_ * 4                   # f32 accumulator scratch
        return fb

    while _footprint(tm, tn) > budget:
        if (tn // 2) % 128 == 0:
            tn //= 2
        elif (tm // 2) % m_quant == 0:
            tm //= 2
        else:
            break

    gm, gn, gk = m_pad // tm, n_pad // tn, k_pad // tk

    # ---- per-call activation padding (cheap at small batch) ----
    x_p = x
    if (m_pad, k_pad) != (B, in_dim):
        x_p = jnp.pad(x, ((0, m_pad - B), (0, k_pad - in_dim)))

    cost = pl.CostEstimate(
        flops=2 * B * out_dim * in_dim,
        bytes_accessed=(B * in_dim * c_size + in_dim * out_dim * c_size
                        + out_dim * 4 + B * out_dim * o_size),
        transcendentals=0,
    )

    if single_k:
        # Grid order chosen to minimize HBM traffic:
        #   M-outer: x read once, weight read gm times.
        #   N-outer: weight read once, x read gn times.
        x_bytes = m_pad * k_pad * c_size
        w_bytes = k_pad * n_pad * c_size
        m_outer = (x_bytes + gm * w_bytes) <= (gn * x_bytes + w_bytes)
        if m_outer:
            grid = (gm, gn)
            x_map = lambda i, j: (i, 0)
            w_map = lambda i, j: (0, j)
            b_map = lambda i, j: (0, j)
            o_map = lambda i, j: (i, j)
        else:
            grid = (gn, gm)
            x_map = lambda j, i: (i, 0)
            w_map = lambda j, i: (0, j)
            b_map = lambda j, i: (0, j)
            o_map = lambda j, i: (i, j)

        kernel = functools.partial(_equal_linear_kernel_single_k, scale=scale)
        out_p = pl.pallas_call(
            kernel,
            out_shape=jax.ShapeDtypeStruct((m_pad, n_pad), out_dtype),
            grid=grid,
            in_specs=[
                pl.BlockSpec((tm, k_pad), x_map),     # activation, K-resident
                pl.BlockSpec((k_pad, tn), w_map),     # weight (in, out) layout
                pl.BlockSpec((1, tn), b_map),         # bias (f32)
            ],
            out_specs=pl.BlockSpec((tm, tn), o_map),
            compiler_params=pltpu.CompilerParams(
                dimension_semantics=("parallel", "parallel"),
                vmem_limit_bytes=budget,
            ),
            cost_estimate=cost,
        )(x_p, w_t, b)
    else:
        kernel = functools.partial(_equal_linear_kernel_multi_k, scale=scale,
                                   tk=tk, x_k_resident=x_k_resident)
        if x_k_resident:
            x_spec = pl.BlockSpec((tm, k_pad), lambda i, j, k: (i, 0))
        else:
            x_spec = pl.BlockSpec((tm, tk), lambda i, j, k: (i, k))
        out_p = pl.pallas_call(
            kernel,
            out_shape=jax.ShapeDtypeStruct((m_pad, n_pad), out_dtype),
            grid=(gm, gn, gk),
            in_specs=[
                x_spec,
                pl.BlockSpec((tk, tn), lambda i, j, k: (k, j)),
                pl.BlockSpec((1, tn), lambda i, j, k: (0, j)),
            ],
            out_specs=pl.BlockSpec((tm, tn), lambda i, j, k: (i, j)),
            scratch_shapes=[pltpu.VMEM((tm, tn), jnp.float32)],
            compiler_params=pltpu.CompilerParams(
                dimension_semantics=("parallel", "parallel", "arbitrary"),
                vmem_limit_bytes=budget,
            ),
            cost_estimate=cost,
        )(x_p, w_t, b)

    return out_p[:B, :out_dim]


def equal_linear(x, weight_orig, bias, *, weight_dtype=None):
    """Convenience path (prep + apply). Prefer prepare_equal_linear once + apply."""
    return equal_linear_apply(x, prepare_equal_linear(weight_orig, bias,
                                                      weight_dtype=weight_dtype))


def _reference(x, weight_orig, bias):
    scale = math.sqrt(2.0 / weight_orig.shape[1])
    return (jnp.dot(x.astype(jnp.float32),
                    (weight_orig.astype(jnp.float32) * scale).T,
                    precision=lax.Precision.HIGHEST)
            + bias.astype(jnp.float32))


if __name__ == "__main__":
    key = jax.random.PRNGKey(0)
    k1, k2, k3, k4, k5, k6, k7, k8 = jax.random.split(key, 8)

    # --- 1) Small shape matching the module's toy usage (f32) --------------
    batch, in_dim, out_dim = 8, 32, 32
    x = jax.random.normal(k1, (batch, in_dim), dtype=jnp.float32)
    w = jax.random.normal(k2, (out_dim, in_dim), dtype=jnp.float32)
    b = jnp.zeros((out_dim,), dtype=jnp.float32)       # EqualLinear init: bias = 0
    out = jax.block_until_ready(equal_linear(x, w, b))
    ref = _reference(x, w, b)
    assert out.shape == (batch, out_dim)
    assert jnp.allclose(out, ref, atol=1e-4, rtol=1e-4), "mismatch (small f32)"

    # --- 2) Non-tile-multiple shape: single-K path, padding, >1 parallel block
    b2, in2, out2 = 48, 640, 384
    x2 = jax.random.normal(k3, (b2, in2), dtype=jnp.float32)
    w2 = jax.random.normal(k4, (out2, in2), dtype=jnp.float32)
    bias2 = jax.random.normal(k5, (out2,), dtype=jnp.float32)   # nonzero bias
    params2 = prepare_equal_linear(w2, bias2)          # one-time prep (pad/transpose)
    out2_v = jax.block_until_ready(equal_linear_apply(x2, params2))
    ref2 = _reference(x2, w2, bias2)
    assert jnp.allclose(out2_v, ref2, atol=1e-3, rtol=1e-4), "mismatch (single-K f32)"

    # --- 3) Large K: exercises the multi-K grid axis with K-resident activation
    b3, in3, out3 = 16, 2304, 256
    x3 = jax.random.normal(k6, (b3, in3), dtype=jnp.float32)
    w3 = jax.random.normal(k7, (out3, in3), dtype=jnp.float32)
    bias3 = jnp.zeros((out3,), dtype=jnp.float32)
    out3_v = jax.block_until_ready(equal_linear(x3, w3, bias3))
    ref3 = _reference(x3, w3, bias3)
    assert jnp.allclose(out3_v, ref3, atol=2e-3, rtol=2e-4), "mismatch (multi-K f32)"

    # --- 4) bf16 weights/activations (f32 accumulation), odd batch ---------
    b4 = 10
    x4 = jax.random.normal(k8, (b4, in2), dtype=jnp.float32)
    params4 = prepare_equal_linear(w2, bias2, weight_dtype=jnp.bfloat16)
    out4_v = jax.block_until_ready(equal_linear_apply(x4, params4))
    ref4 = _reference(x4, w2, bias2)
    assert jnp.allclose(out4_v, ref4, atol=5e-2, rtol=5e-2), "mismatch (bf16)"

    print("KERNEL_OK")
</pallas_src>

<mosaic_0001>
module attributes {stable_mosaic.version = 11 : i64} {
  func.func @_equal_linear_kernel_single_k(%arg0: i32, %arg1: i32, %arg2: memref<8x128xf32, #tpu.memory_space<vmem>>, %arg3: memref<128x128xf32, #tpu.memory_space<vmem>>, %arg4: memref<1x128xf32, #tpu.memory_space<vmem>>, %arg5: memref<8x128xf32, #tpu.memory_space<vmem>>) attributes {dimension_semantics = [#tpu.dimension_semantics<parallel>, #tpu.dimension_semantics<parallel>], iteration_bounds = array<i64: 1, 1>, scalar_prefetch = 0 : i64, scratch_operands = 0 : i64, tpu.core_type = #tpu.core_type<tc>, window_params = [{transform_indices = @transform_0, window_bounds = array<i64: 8, 128>}, {transform_indices = @transform_1, window_bounds = array<i64: 128, 128>}, {transform_indices = @transform_2, window_bounds = array<i64: 1, 128>}, {transform_indices = @transform_3, window_bounds = array<i64: 8, 128>}]} {
    %c0 = arith.constant 0 : index
    %c0_0 = arith.constant 0 : index
    %0 = vector.load %arg2[%c0, %c0_0] : memref<8x128xf32, #tpu.memory_space<vmem>>, vector<8x128xf32>
    %c0_1 = arith.constant 0 : index
    %c0_2 = arith.constant 0 : index
    %1 = vector.load %arg3[%c0_1, %c0_2] : memref<128x128xf32, #tpu.memory_space<vmem>>, vector<128x128xf32>
    %cst = arith.constant dense<0.000000e+00> : vector<8x128xf32>
    %2 = tpu.matmul %0, %1, %cst {dimension_numbers = #tpu.dot_dimension_numbers<[1], [0], [0], [1], [0, 0, 1, 1], [], []>} : vector<8x128xf32>, vector<128x128xf32>, vector<8x128xf32> -> vector<8x128xf32>
    %cst_3 = arith.constant 2.500000e-01 : f32
    %3 = vector.broadcast %cst_3 : f32 to vector<8x128xf32>
    %4 = arith.mulf %2, %3 : vector<8x128xf32>
    %c0_4 = arith.constant 0 : index
    %c0_5 = arith.constant 0 : index
    %5 = vector.load %arg4[%c0_4, %c0_5] : memref<1x128xf32, #tpu.memory_space<vmem>>, vector<1x128xf32>
    %6 = vector.broadcast %5 : vector<1x128xf32> to vector<8x128xf32>
    %7 = arith.addf %4, %6 : vector<8x128xf32>
    %c0_6 = arith.constant 0 : index
    %c0_7 = arith.constant 0 : index
    %8 = vector.load %arg5[%c0_6, %c0_7] : memref<8x128xf32, #tpu.memory_space<vmem>>, vector<8x128xf32>
    tpu.vector_store %arg5[%c0_6, %c0_7], %7 {strides = array<i32>} : memref<8x128xf32, #tpu.memory_space<vmem>>, vector<8x128xf32>,
    return
  }
  func.func @transform_0(%arg0: i32, %arg1: i32) -> (i32, i32) {
    %c0_i32 = arith.constant 0 : i32
    %c0_i32_0 = arith.constant 0 : i32
    return %arg0, %c0_i32 : i32, i32
  }
  func.func @transform_1(%arg0: i32, %arg1: i32) -> (i32, i32) {
    %c0_i32 = arith.constant 0 : i32
    %c0_i32_0 = arith.constant 0 : i32
    return %c0_i32, %arg1 : i32, i32
  }
  func.func @transform_2(%arg0: i32, %arg1: i32) -> (i32, i32) {
    %c0_i32 = arith.constant 0 : i32
    %c0_i32_0 = arith.constant 0 : i32
    return %c0_i32, %arg1 : i32, i32
  }
  func.func @transform_3(%arg0: i32, %arg1: i32) -> (i32, i32) {
    %c0_i32 = arith.constant 0 : i32
    return %arg0, %arg1 : i32, i32
  }
}

</mosaic_0001>

<llo_original>
// kernel: tpu_custom_call.1
$region0: #{tpu_custom_call.1}
  #allocation0 [shape = 'u32[]', space=smem, size = 0x4, offset = 0x4, fixed_abs, tag = 'smem constant byte address 0x4 - core index']
  #allocation1 [shape = 'u32[144,128]{1,0:T(1,128)}', space=vmem, size = 0x12000, scoped, tag = 'internal scratch']
  %s0 = inlined_call_operand.hbm [shape: f32[8,128], index: 0, kind: input, shape index: {}]
  %s1 = inlined_call_operand.hbm [shape: f32[128,128], index: 1, kind: input, shape index: {}]
  %s2 = inlined_call_operand.vmem [shape: f32[1,128], index: 2, kind: input, shape index: {}]
  %s3 = inlined_call_operand.hbm [shape: f32[8,128], index: 3, kind: output, shape index: {}]
  %s4 = sld [smem:[#allocation0]]
  $region30: #{tpu_custom_call.1} parent=0
    _
  %s6 = ssub.s32 1, %s4
  %s7 = scalar_select 0, %s6, %s4
  $region1: #{tpu_custom_call.1} parent=0
    #allocation2 [shape = 'u8[4096]{0}', space=vmem, size = 0x1000, scoped, tag = 'input window, operand 0, single buffered']
    #allocation3 [shape = 's32[1]{0}', space=sflag, size = 0x4, scoped, tag = 'scoped memory for tpu_custom_call.1']
    #allocation4 [shape = 's32[1]{0}', space=sflag, size = 0x4, scoped, tag = 'scoped memory for tpu_custom_call.1']
    #allocation5 [shape = 'u8[65536]{0}', space=vmem, size = 0x10000, scoped, tag = 'input window, operand 1, single buffered']
    #allocation6 [shape = 's32[1]{0}', space=sflag, size = 0x4, scoped, tag = 'scoped memory for tpu_custom_call.1']
    #allocation7 [shape = 'u8[4096]{0}', space=vmem, size = 0x1000, scoped, tag = 'output window, operand 0, single buffered']
    %8 = vsyncpa [#allocation3], 0
    %9 = vsyncpa [#allocation6], 0
    %10 = vsyncpa [#allocation4], 0
    // Predicated region
    $region2: #{tpu_custom_call.1} parent=1 // pred_check
      _
    $region3: #{tpu_custom_call.1} parent=1 // pred_check_branch
      %12 = sbr.rel (0) target = $region5
    $region4: #{tpu_custom_call.1} parent=1 // pred_region
      %s14 = ssub.s32 128, 128
      %15 = vsyncadd [#allocation3], %s14
      %s17 = sshll.u32 [#allocation2], 4
      %s18 = int_to_ptr.vmem [resolvable:$true] %s17
      %20 = dma.hbm_to_vmem [thread:$0]  %s0, 128, %s18, [#allocation3]
    $region5: #{tpu_custom_call.1} parent=1 // pred_fallthru
      _
    // Predicated region
    $region6: #{tpu_custom_call.1} parent=1 // pred_check
      _
    $region7: #{tpu_custom_call.1} parent=1 // pred_check_branch
      %22 = sbr.rel (0) target = $region9
    $region8: #{tpu_custom_call.1} parent=1 // pred_region
      %s24 = ssub.s32 2048, 2048
      %25 = vsyncadd [#allocation6], %s24
      %s26 = sshll.u32 [#allocation5], 4
      %s27 = int_to_ptr.vmem [resolvable:$true] %s26
      %32 = dma.hbm_to_vmem [thread:$0]  %s1, 2048, %s27, [#allocation6], 128, 128, 8
    $region9: #{tpu_custom_call.1} parent=1 // pred_fallthru
      _
    // Predicated region
    $region10: #{tpu_custom_call.1} parent=1 // pred_check
      _
    $region11: #{tpu_custom_call.1} parent=1 // pred_check_branch
      %34 = sbr.rel (0) target = $region13
    $region12: #{tpu_custom_call.1} parent=1 // pred_region
      _
    $region13: #{tpu_custom_call.1} parent=1 // pred_fallthru
      _
    // Predicated region
    $region14: #{tpu_custom_call.1} parent=1 // pred_check
      _
    $region15: #{tpu_custom_call.1} parent=1 // pred_check_branch
      %36 = sbr.rel (0) target = $region17
    $region16: #{tpu_custom_call.1} parent=1 // pred_region
      %37 = dma.done [#allocation3], 128
    $region17: #{tpu_custom_call.1} parent=1 // pred_fallthru
      _
    // Predicated region
    $region18: #{tpu_custom_call.1} parent=1 // pred_check
      _
    $region19: #{tpu_custom_call.1} parent=1 // pred_check_branch
      %39 = sbr.rel (0) target = $region21
    $region20: #{tpu_custom_call.1} parent=1 // pred_region
      %40 = dma.done [#allocation6], 2048
    $region21: #{tpu_custom_call.1} parent=1 // pred_fallthru
      _
    %v41 = vld [vmem:[#allocation2] sm:$0xff]
    %v42 = vld [vmem:[#allocation5] sm:$0xff]
    %v43 = vld [vmem:[#allocation5 + $0x8] sm:$0xff]
    %v44 = vld [vmem:[#allocation5 + $0x10] sm:$0xff]
    %v45 = vld [vmem:[#allocation5 + $0x18] sm:$0xff]
    %v46 = vld [vmem:[#allocation5 + $0x20] sm:$0xff]
    %v47 = vld [vmem:[#allocation5 + $0x28] sm:$0xff]
    %v48 = vld [vmem:[#allocation5 + $0x30] sm:$0xff]
    %v49 = vld [vmem:[#allocation5 + $0x38] sm:$0xff]
    %v50 = vld [vmem:[#allocation5 + $0x40] sm:$0xff]
    %v51 = vld [vmem:[#allocation5 + $0x48] sm:$0xff]
    %v52 = vld [vmem:[#allocation5 + $0x50] sm:$0xff]
    %v53 = vld [vmem:[#allocation5 + $0x58] sm:$0xff]
    %v54 = vld [vmem:[#allocation5 + $0x60] sm:$0xff]
    %v55 = vld [vmem:[#allocation5 + $0x68] sm:$0xff]
    %v56 = vld [vmem:[#allocation5 + $0x70] sm:$0xff]
    %v57 = vld [vmem:[#allocation5 + $0x78] sm:$0xff]
    %58 = vmatprep.subr.mxu0 0.0
    %59 = vmatpush1.msra.mxu0 %v57
    %60 = vmatprep.subr.mxu0 0.0
    %61 = vmatpush1.msra.mxu0 %v56
    %62 = vmatprep.subr.mxu0 0.0
    %63 = vmatpush1.msra.mxu0 %v55
    %64 = vmatprep.subr.mxu0 0.0
    %65 = vmatpush1.msra.mxu0 %v54
    %66 = vmatprep.subr.mxu0 0.0
    %67 = vmatpush1.msra.mxu0 %v53
    %68 = vmatprep.subr.mxu0 0.0
    %69 = vmatpush1.msra.mxu0 %v52
    %70 = vmatprep.subr.mxu0 0.0
    %71 = vmatpush1.msra.mxu0 %v51
    %72 = vmatprep.subr.mxu0 0.0
    %73 = vmatpush1.msra.mxu0 %v50
    %74 = vmatprep.subr.mxu0 0.0
    %75 = vmatpush1.msra.mxu0 %v49
    %76 = vmatprep.subr.mxu0 0.0
    %77 = vmatpush1.msra.mxu0 %v48
    %78 = vmatprep.subr.mxu0 0.0
    %79 = vmatpush1.msra.mxu0 %v47
    %80 = vmatprep.subr.mxu0 0.0
    %81 = vmatpush1.msra.mxu0 %v46
    %82 = vmatprep.subr.mxu0 0.0
    %83 = vmatpush1.msra.mxu0 %v45
    %84 = vmatprep.subr.mxu0 0.0
    %85 = vmatpush1.msra.mxu0 %v44
    %86 = vmatprep.subr.mxu0 0.0
    %87 = vmatpush1.msra.mxu0 %v43
    %88 = vmatprep.subr.mxu0 0.0
    %89 = vmatpush1.msra.mxu0 %v42
    %90 = vmatprep.subr.mxu0 0.0
    %91 = vmatpush2.msra.mxu0 0.0
    %92 = vmatprep.subr.mxu0 0.0
    %93 = vmatpush2.msra.mxu0 0.0
    %94 = vmatprep.subr.mxu0 0.0
    %95 = vmatpush2.msra.mxu0 0.0
    %96 = vmatprep.subr.mxu0 0.0
    %97 = vmatpush2.msra.mxu0 0.0
    %98 = vmatprep.subr.mxu0 0.0
    %99 = vmatpush2.msra.mxu0 0.0
    %100 = vmatprep.subr.mxu0 0.0
    %101 = vmatpush2.msra.mxu0 0.0
    %102 = vmatprep.subr.mxu0 0.0
    %103 = vmatpush2.msra.mxu0 0.0
    %104 = vmatprep.subr.mxu0 0.0
    %105 = vmatpush2.msra.mxu0 0.0
    %106 = vmatprep.subr.mxu0 0.0
    %107 = vmatpush2.msra.mxu0 0.0
    %108 = vmatprep.subr.mxu0 0.0
    %109 = vmatpush2.msra.mxu0 0.0
    %110 = vmatprep.subr.mxu0 0.0
    %111 = vmatpush2.msra.mxu0 0.0
    %112 = vmatprep.subr.mxu0 0.0
    %113 = vmatpush2.msra.mxu0 0.0
    %114 = vmatprep.subr.mxu0 0.0
    %115 = vmatpush2.msra.mxu0 0.0
    %116 = vmatprep.subr.mxu0 0.0
    %117 = vmatpush2.msra.mxu0 0.0
    %118 = vmatprep.subr.mxu0 0.0
    %119 = vmatpush2.msra.mxu0 0.0
    %120 = vmatprep.subr.mxu0 0.0
    %121 = vmatpush2.msra.mxu0 0.0
    %122 = vmatprep.mubr.f32.mxu0 0.0
    %123 = vmatmul.mubr.f32.gmra.mxu0 %v41
    %v124 = vpop.f32.mrf.mxu0
    %v125 = vadd.f32 0.0, %v124
    %v126 = vpop.f32.mrf.mxu0
    %127 = vdwg.mxu0
    %v128 = vmul.f32 %v125, 0.25
    %v129 = vld [vmem:[%s2] sm:$0x1]
    %v131 = vlaneseq
    %v132 = vshrl.u32 %v131, 7
    %v133 = vsub.s32 0, %v132
    %v134 = vrot.slane %v129, %v133
    %v136 = vadd.f32 %v128, %v134
    %137 = vst [vmem:[#allocation7] sm:$0xff] %v136
    // Predicated region
    $region22: #{tpu_custom_call.1} parent=1 // pred_check
      _
    $region23: #{tpu_custom_call.1} parent=1 // pred_check_branch
      %139 = sbr.rel (0) target = $region25
    $region24: #{tpu_custom_call.1} parent=1 // pred_region
      %s141 = ssub.s32 128, 128
      %142 = vsyncadd [#allocation4], %s141
      %s144 = sshll.u32 [#allocation7], 4
      %s145 = int_to_ptr.vmem [resolvable:$true] %s144
      %147 = dma.vmem_to_hbm [thread:$0]  %s145, 128, %s3, [#allocation4]
    $region25: #{tpu_custom_call.1} parent=1 // pred_fallthru
      _
    // Predicated region
    $region26: #{tpu_custom_call.1} parent=1 // pred_check
      _
    $region27: #{tpu_custom_call.1} parent=1 // pred_check_branch
      %149 = sbr.rel (0) target = $region29
    $region28: #{tpu_custom_call.1} parent=1 // pred_region
      %150 = dma.done [#allocation4], 128
    $region29: #{tpu_custom_call.1} parent=1 // pred_fallthru
      _
    %151 = vsyncpa [#allocation3], 1
    %152 = vsyncpa [#allocation6], 1
    %153 = vsyncpa [#allocation4], 1

</llo_original>
